<compile_context>
chip_gen: v7x
topology: tpu7x:2x2x1
jax: 0.10.0
libtpu: 0.0.40
codegen_flags: <defaults>
</compile_context>

<pallas_src>
import numpy as np
import jax
import jax.numpy as jnp
from jax.experimental import pallas as pl
from jax.experimental.pallas import tpu as pltpu


def _round_up(x, m):
    return ((x + m - 1) // m) * m


def _tpu_generation():
    try:
        kind = jax.devices()[0].device_kind.lower()
    except Exception:
        return "other"
    if "v5 lite" in kind or "v5e" in kind or "v5lite" in kind:
        return "v5e"
    if "v6" in kind:
        return "v6e"
    if "v7" in kind or "7x" in kind:
        return "v7x"
    return "other"


def _vmem_capacity_bytes(gen):
    try:
        return int(pltpu.get_tpu_info().vmem_capacity_bytes)
    except Exception:
        return (64 << 20) if gen == "v7x" else (128 << 20)


def _buffered_single_supported():
    """Feature probe only (construction, no compile): pipeline_mode=Buffered(1)."""
    if not hasattr(pl, "Buffered"):
        return False
    try:
        pl.BlockSpec((8, 128), lambda i: (0, 0), pipeline_mode=pl.Buffered(1))
    except Exception:
        return False
    return True


_GEN = _tpu_generation()
_VMEM_CAP = _vmem_capacity_bytes(_GEN)
_HAS_BUFFERED1 = _buffered_single_supported()


def _pick_block_b(B, gen):
    """Generation-aware batch tile (always a multiple of 8)."""
    b8 = _round_up(max(B, 8), 8)
    if gen == "v5e":
        # 128-wide MXU, small scoped VMEM: 128-row blocks.
        return min(128, b8)
    if gen == "v7x":
        # Megacore batch sharding only pays once MXU-bound; below that a split
        # just duplicates the weight DMA into both cores.
        return 256 if B >= 512 else min(256, b8)
    # v6e / default: single TC -> no benefit from forcing >= 2 grid steps.
    return min(256, b8)


# --------------------------------------------------------------------------
# One-time parameter preparation (hoisted out of the per-call forward path).
# --------------------------------------------------------------------------
def prepare_params(params):
    """bf16 matmul weights, f32 row-vector biases, last layer lane-padded to
    a multiple of 128.  Call once (after init / checkpoint load), not per step."""
    w1, b1 = params["w1"], params["b1"]
    w2, b2 = params["w2"], params["b2"]
    w3, b3 = params["w3"], params["b3"]
    res = int(w3.shape[1])
    res_pad = _round_up(res, 128)
    w3p = w3.astype(jnp.bfloat16)
    b3p = jnp.asarray(b3, jnp.float32).reshape(1, -1)
    if res_pad != res:
        w3p = jnp.pad(w3p, ((0, 0), (0, res_pad - res)))
        b3p = jnp.pad(b3p, ((0, 0), (0, res_pad - res)))
    return {
        "w1": w1.astype(jnp.bfloat16),
        "b1": jnp.asarray(b1, jnp.float32).reshape(1, -1),
        "w2": w2.astype(jnp.bfloat16),
        "b2": jnp.asarray(b2, jnp.float32).reshape(1, -1),
        "w3": w3p,
        "b3": b3p,
        "res_size": res,  # python int: number of real output columns
    }


# --------------------------------------------------------------------------
# Kernel
# --------------------------------------------------------------------------
def mlp_g_kernel(x_ref, w1_ref, b1_ref, w2_ref, b2_ref, w3_ref, b3_ref, o_ref):
    # fc1 + LeakyReLU(0.2): one K=(nz+attSize) MXU pass, f32 accumulation.
    h = jnp.dot(x_ref[...], w1_ref[...],
                preferred_element_type=jnp.float32) + b1_ref[...]
    h = jnp.where(h > 0, h, 0.2 * h)
    # fc2 + ReLU
    h = jnp.dot(h.astype(jnp.bfloat16), w2_ref[...],
                preferred_element_type=jnp.float32) + b2_ref[...]
    h = jnp.maximum(h, 0.0)
    # fc3 + ReLU
    h = jnp.dot(h.astype(jnp.bfloat16), w3_ref[...],
                preferred_element_type=jnp.float32) + b3_ref[...]
    o_ref[...] = jnp.maximum(h, 0.0).astype(o_ref.dtype)


# --------------------------------------------------------------------------
# Wrapper
# --------------------------------------------------------------------------
def mlp_g_forward(noise, att, prep, *, block_b=None, out_dtype=jnp.float32):
    """Pallas MLP_G forward.  noise: (B, nz), att: (B, attSize).
    `prep` must come from prepare_params() (bf16, pre-padded weights)."""
    B = noise.shape[0]
    w1, b1, w2, b2, w3, b3 = (prep[k] for k in ("w1", "b1", "w2", "b2", "w3", "b3"))
    K, ngh = w1.shape
    res_pad = w3.shape[1]
    res = prep["res_size"]
    assert noise.shape[1] + att.shape[1] == K

    # Lane-concat the inputs once (bf16): a single K-dot replaces two K/2 MXU
    # passes and halves the input DMA bytes vs f32 split inputs.
    x = jnp.concatenate(
        (noise.astype(jnp.bfloat16), att.astype(jnp.bfloat16)), axis=1)

    if block_b is None:
        block_b = _pick_block_b(B, _GEN)
    B_pad = _round_up(B, block_b)
    if B_pad != B:
        x = jnp.pad(x, ((0, B_pad - B), (0, 0)))
    steps = B_pad // block_b
    grid = (steps,)

    # Megacore batch sharding: useless on single-TC v5e/v6e; on v7x it
    # duplicates the weight DMA into both cores, so only enable when MXU-bound.
    if _GEN == "v7x":
        parallel = steps >= 2 and B >= 512
    else:
        parallel = steps >= 2
    dim_sem = ("parallel",) if parallel else ("arbitrary",)

    # Weight residency / VMEM budget (generation-aware cap with headroom).
    weight_bytes = (w1.size + w2.size + w3.size) * 2       # bf16, resident
    bias_bytes = (b1.size + b2.size + b3.size) * 4
    single_buffer = _HAS_BUFFERED1 and (2 * weight_bytes > _VMEM_CAP // 4)
    wbuf = 1 if single_buffer else 2
    io_vmem = 2 * block_b * K * 2 + 2 * block_b * res_pad * np.dtype(out_dtype).itemsize
    act_vmem = 2 * block_b * ngh * 4 + block_b * res_pad * 4
    need = weight_bytes * wbuf + bias_bytes * wbuf + io_vmem + act_vmem
    cap = _VMEM_CAP - (8 << 20)
    vmem_limit = int(min(cap, max(32 << 20, int(1.5 * need))))

    flops = 2 * B_pad * (K * ngh + ngh * ngh + ngh * res_pad)
    bytes_accessed = (x.size * 2 + weight_bytes + bias_bytes
                      + B_pad * res_pad * np.dtype(out_dtype).itemsize)
    cost = pl.CostEstimate(flops=flops, transcendentals=0,
                           bytes_accessed=bytes_accessed)

    def wspec(shape):
        # Constant index_map -> the block is never re-fetched across the batch
        # grid; single-buffer it (halves VMEM residency) when weights are big.
        if single_buffer:
            return pl.BlockSpec(shape, lambda i: (0, 0),
                                pipeline_mode=pl.Buffered(1))
        return pl.BlockSpec(shape, lambda i: (0, 0))

    out = pl.pallas_call(
        mlp_g_kernel,
        out_shape=jax.ShapeDtypeStruct((B_pad, res_pad), out_dtype),
        grid_spec=pltpu.PrefetchScalarGridSpec(
            num_scalar_prefetch=0,
            grid=grid,
            in_specs=[
                pl.BlockSpec((block_b, K), lambda i: (i, 0)),   # x = noise|att
                wspec((K, ngh)),                                # w1
                wspec((1, ngh)),                                # b1
                wspec((ngh, ngh)),                              # w2
                wspec((1, ngh)),                                # b2
                wspec((ngh, res_pad)),                          # w3 (padded)
                wspec((1, res_pad)),                            # b3 (padded)
            ],
            out_specs=pl.BlockSpec((block_b, res_pad), lambda i: (i, 0)),
        ),
        compiler_params=pltpu.CompilerParams(
            dimension_semantics=dim_sem,
            vmem_limit_bytes=vmem_limit,
        ),
        cost_estimate=cost,
    )(x, w1, b1, w2, b2, w3, b3)

    out = out[:B] if B_pad != B else out
    return out[:, :res] if res_pad != res else out


# --------------------------------------------------------------------------
# Reference / init (mirrors weights_init: Linear ~ N(0, 0.02), bias = 0)
# --------------------------------------------------------------------------
def init_params(key, att_size, nz, ngh, res_size, dtype=jnp.float32):
    ks = jax.random.split(key, 3)
    f_in = nz + att_size  # cat((noise, att), 1): noise columns first
    return {
        "w1": (0.02 * jax.random.normal(ks[0], (f_in, ngh))).astype(dtype),
        "b1": jnp.zeros((1, ngh), dtype),
        "w2": (0.02 * jax.random.normal(ks[1], (ngh, ngh))).astype(dtype),
        "b2": jnp.zeros((1, ngh), dtype),
        "w3": (0.02 * jax.random.normal(ks[2], (ngh, res_size))).astype(dtype),
        "b3": jnp.zeros((1, res_size), dtype),
    }


def mlp_g_ref(noise, att, params):
    """Pure-JAX f32 reference for the correctness check."""
    h = jnp.concatenate((noise, att), axis=1)
    h = h @ params["w1"] + params["b1"]
    h = jnp.where(h > 0, h, 0.2 * h)
    h = jnp.maximum(h @ params["w2"] + params["b2"], 0.0)
    h = jnp.maximum(h @ params["w3"] + params["b3"], 0.0)
    return h


if __name__ == "__main__":
    # Small, lane-friendly shapes consistent with the module
    # (opt.attSize, opt.nz, opt.ngh, opt.resSize).
    batch, att_size, nz, ngh, res_size = 16, 32, 32, 128, 256

    key = jax.random.PRNGKey(0)
    k_noise, k_att, k_params = jax.random.split(key, 3)
    noise = jax.random.normal(k_noise, (batch, nz), jnp.float32)
    att = jax.random.normal(k_att, (batch, att_size), jnp.float32)
    params = init_params(k_params, att_size, nz, ngh, res_size)

    prep = prepare_params(params)  # one-time weight prep (hoisted out of fwd)
    out = jax.block_until_ready(mlp_g_forward(noise, att, prep))
    ref = mlp_g_ref(noise, att, params)

    assert out.shape == (batch, res_size)
    # bf16 matmul operands/activations with f32 accumulation -> loose tolerance.
    assert jnp.allclose(out, ref, atol=2e-2, rtol=2e-2), (
        "max abs err = %f" % float(jnp.max(jnp.abs(out - ref))))
    print("KERNEL_OK")
</pallas_src>

<mosaic_0001>
module attributes {stable_mosaic.version = 11 : i64} {
  func.func @mlp_g_kernel(%arg0: i32, %arg1: memref<16x64xbf16, #tpu.memory_space<vmem>>, %arg2: memref<64x128xbf16, #tpu.memory_space<vmem>>, %arg3: memref<1x128xf32, #tpu.memory_space<vmem>>, %arg4: memref<128x128xbf16, #tpu.memory_space<vmem>>, %arg5: memref<1x128xf32, #tpu.memory_space<vmem>>, %arg6: memref<128x256xbf16, #tpu.memory_space<vmem>>, %arg7: memref<1x256xf32, #tpu.memory_space<vmem>>, %arg8: memref<16x256xf32, #tpu.memory_space<vmem>>) attributes {dimension_semantics = [#tpu.dimension_semantics<arbitrary>], iteration_bounds = array<i64: 1>, scalar_prefetch = 0 : i64, scratch_operands = 0 : i64, tpu.core_type = #tpu.core_type<tc>, window_params = [{transform_indices = @transform_0, window_bounds = array<i64: 16, 64>}, {pipeline_mode = #tpu.pipeline_mode<synchronous>, transform_indices = @transform_1, window_bounds = array<i64: 64, 128>}, {pipeline_mode = #tpu.pipeline_mode<synchronous>, transform_indices = @transform_2, window_bounds = array<i64: 1, 128>}, {pipeline_mode = #tpu.pipeline_mode<synchronous>, transform_indices = @transform_3, window_bounds = array<i64: 128, 128>}, {pipeline_mode = #tpu.pipeline_mode<synchronous>, transform_indices = @transform_4, window_bounds = array<i64: 1, 128>}, {pipeline_mode = #tpu.pipeline_mode<synchronous>, transform_indices = @transform_5, window_bounds = array<i64: 128, 256>}, {pipeline_mode = #tpu.pipeline_mode<synchronous>, transform_indices = @transform_6, window_bounds = array<i64: 1, 256>}, {transform_indices = @transform_7, window_bounds = array<i64: 16, 256>}]} {
    %c0 = arith.constant 0 : index
    %c0_0 = arith.constant 0 : index
    %0 = vector.load %arg1[%c0, %c0_0] : memref<16x64xbf16, #tpu.memory_space<vmem>>, vector<16x64xbf16>
    %c0_1 = arith.constant 0 : index
    %c0_2 = arith.constant 0 : index
    %1 = vector.load %arg2[%c0_1, %c0_2] : memref<64x128xbf16, #tpu.memory_space<vmem>>, vector<64x128xbf16>
    %cst = arith.constant dense<0.000000e+00> : vector<16x128xf32>
    %2 = tpu.matmul %0, %1, %cst {dimension_numbers = #tpu.dot_dimension_numbers<[1], [0], [0], [1], [0, 0, 1, 1], [], []>} : vector<16x64xbf16>, vector<64x128xbf16>, vector<16x128xf32> -> vector<16x128xf32>
    %c0_3 = arith.constant 0 : index
    %c0_4 = arith.constant 0 : index
    %3 = vector.load %arg3[%c0_3, %c0_4] : memref<1x128xf32, #tpu.memory_space<vmem>>, vector<1x128xf32>
    %4 = vector.broadcast %3 : vector<1x128xf32> to vector<16x128xf32>
    %5 = arith.addf %2, %4 : vector<16x128xf32>
    %cst_5 = arith.constant 0.000000e+00 : f32
    %6 = vector.broadcast %cst_5 : f32 to vector<16x128xf32>
    %7 = arith.cmpf ogt, %5, %6 : vector<16x128xf32>
    %cst_6 = arith.constant 2.000000e-01 : f32
    %8 = vector.broadcast %cst_6 : f32 to vector<16x128xf32>
    %9 = arith.mulf %8, %5 : vector<16x128xf32>
    %10 = arith.select %7, %5, %9 : vector<16x128xi1>, vector<16x128xf32>
    %11 = arith.truncf %10 : vector<16x128xf32> to vector<16x128xbf16>
    %c0_7 = arith.constant 0 : index
    %c0_8 = arith.constant 0 : index
    %12 = vector.load %arg4[%c0_7, %c0_8] : memref<128x128xbf16, #tpu.memory_space<vmem>>, vector<128x128xbf16>
    %cst_9 = arith.constant dense<0.000000e+00> : vector<16x128xf32>
    %13 = tpu.matmul %11, %12, %cst_9 {dimension_numbers = #tpu.dot_dimension_numbers<[1], [0], [0], [1], [0, 0, 1, 1], [], []>} : vector<16x128xbf16>, vector<128x128xbf16>, vector<16x128xf32> -> vector<16x128xf32>
    %c0_10 = arith.constant 0 : index
    %c0_11 = arith.constant 0 : index
    %14 = vector.load %arg5[%c0_10, %c0_11] : memref<1x128xf32, #tpu.memory_space<vmem>>, vector<1x128xf32>
    %15 = vector.broadcast %14 : vector<1x128xf32> to vector<16x128xf32>
    %16 = arith.addf %13, %15 : vector<16x128xf32>
    %cst_12 = arith.constant 0.000000e+00 : f32
    %17 = vector.broadcast %cst_12 : f32 to vector<16x128xf32>
    %18 = arith.maximumf %16, %17 : vector<16x128xf32>
    %19 = arith.truncf %18 : vector<16x128xf32> to vector<16x128xbf16>
    %c0_13 = arith.constant 0 : index
    %c0_14 = arith.constant 0 : index
    %20 = vector.load %arg6[%c0_13, %c0_14] : memref<128x256xbf16, #tpu.memory_space<vmem>>, vector<128x256xbf16>
    %cst_15 = arith.constant dense<0.000000e+00> : vector<16x256xf32>
    %21 = tpu.matmul %19, %20, %cst_15 {dimension_numbers = #tpu.dot_dimension_numbers<[1], [0], [0], [1], [0, 0, 1, 1], [], []>} : vector<16x128xbf16>, vector<128x256xbf16>, vector<16x256xf32> -> vector<16x256xf32>
    %c0_16 = arith.constant 0 : index
    %c0_17 = arith.constant 0 : index
    %22 = vector.load %arg7[%c0_16, %c0_17] : memref<1x256xf32, #tpu.memory_space<vmem>>, vector<1x256xf32>
    %23 = vector.broadcast %22 : vector<1x256xf32> to vector<16x256xf32>
    %24 = arith.addf %21, %23 : vector<16x256xf32>
    %cst_18 = arith.constant 0.000000e+00 : f32
    %25 = vector.broadcast %cst_18 : f32 to vector<16x256xf32>
    %26 = arith.maximumf %24, %25 : vector<16x256xf32>
    %c0_19 = arith.constant 0 : index
    %c0_20 = arith.constant 0 : index
    %27 = vector.load %arg8[%c0_19, %c0_20] : memref<16x256xf32, #tpu.memory_space<vmem>>, vector<16x256xf32>
    tpu.vector_store %arg8[%c0_19, %c0_20], %26 {strides = array<i32>} : memref<16x256xf32, #tpu.memory_space<vmem>>, vector<16x256xf32>,
    return
  }
  func.func @transform_0(%arg0: i32) -> (i32, i32) {
    %c0_i32 = arith.constant 0 : i32
    %c0_i32_0 = arith.constant 0 : i32
    return %arg0, %c0_i32 : i32, i32
  }
  func.func @transform_1(%arg0: i32) -> (i32, i32) {
    %c0_i32 = arith.constant 0 : i32
    %c0_i32_0 = arith.constant 0 : i32
    %c0_i32_1 = arith.constant 0 : i32
    return %c0_i32, %c0_i32_0 : i32, i32
  }
  func.func @transform_2(%arg0: i32) -> (i32, i32) {
    %c0_i32 = arith.constant 0 : i32
    %c0_i32_0 = arith.constant 0 : i32
    %c0_i32_1 = arith.constant 0 : i32
    return %c0_i32, %c0_i32_0 : i32, i32
  }
  func.func @transform_3(%arg0: i32) -> (i32, i32) {
    %c0_i32 = arith.constant 0 : i32
    %c0_i32_0 = arith.constant 0 : i32
    %c0_i32_1 = arith.constant 0 : i32
    return %c0_i32, %c0_i32_0 : i32, i32
  }
  func.func @transform_4(%arg0: i32) -> (i32, i32) {
    %c0_i32 = arith.constant 0 : i32
    %c0_i32_0 = arith.constant 0 : i32
    %c0_i32_1 = arith.constant 0 : i32
    return %c0_i32, %c0_i32_0 : i32, i32
  }
  func.func @transform_5(%arg0: i32) -> (i32, i32) {
    %c0_i32 = arith.constant 0 : i32
    %c0_i32_0 = arith.constant 0 : i32
    %c0_i32_1 = arith.constant 0 : i32
    return %c0_i32, %c0_i32_0 : i32, i32
  }
  func.func @transform_6(%arg0: i32) -> (i32, i32) {
    %c0_i32 = arith.constant 0 : i32
    %c0_i32_0 = arith.constant 0 : i32
    %c0_i32_1 = arith.constant 0 : i32
    return %c0_i32, %c0_i32_0 : i32, i32
  }
  func.func @transform_7(%arg0: i32) -> (i32, i32) {
    %c0_i32 = arith.constant 0 : i32
    %c0_i32_0 = arith.constant 0 : i32
    return %arg0, %c0_i32 : i32, i32
  }
}

</mosaic_0001>

<llo_original>
// kernel: tpu_custom_call.1
$region0: #{tpu_custom_call.1}
  #allocation0 [shape = 'u32[]', space=smem, size = 0x4, offset = 0x4, fixed_abs, tag = 'smem constant byte address 0x4 - core index']
  #allocation1 [shape = 'u32[144,128]{1,0:T(1,128)}', space=vmem, size = 0x12000, scoped, tag = 'internal scratch']
  %s0 = inlined_call_operand.hbm [shape: bf16[16,64], index: 0, kind: input, shape index: {}]
  %s1 = inlined_call_operand.hbm [shape: bf16[64,128], index: 1, kind: input, shape index: {}]
  %s2 = inlined_call_operand.vmem [shape: f32[1,128], index: 2, kind: input, shape index: {}]
  %s3 = inlined_call_operand.hbm [shape: bf16[128,128], index: 3, kind: input, shape index: {}]
  %s4 = inlined_call_operand.vmem [shape: f32[1,128], index: 4, kind: input, shape index: {}]
  %s5 = inlined_call_operand.hbm [shape: bf16[128,256], index: 5, kind: input, shape index: {}]
  %s6 = inlined_call_operand.vmem [shape: f32[1,256], index: 6, kind: input, shape index: {}]
  %s7 = inlined_call_operand.hbm [shape: f32[16,256], index: 7, kind: output, shape index: {}]
  %s8 = sld [smem:[#allocation0]]
  $region54: #{tpu_custom_call.1} parent=0
    _
  %s10 = ssub.s32 1, %s8
  %s11 = scalar_select 0, %s10, %s8
  $region1: #{tpu_custom_call.1} parent=0
    #allocation2 [shape = 'u8[4096]{0}', space=vmem, size = 0x1000, scoped, tag = 'input window, operand 0, single buffered']
    #allocation3 [shape = 's32[1]{0}', space=sflag, size = 0x4, scoped, tag = 'scoped memory for tpu_custom_call.1']
    #allocation4 [shape = 's32[1]{0}', space=sflag, size = 0x4, scoped, tag = 'scoped memory for tpu_custom_call.1']
    #allocation5 [shape = 'u8[16384]{0}', space=vmem, size = 0x4000, scoped, tag = 'input window, operand 1, single buffered']
    #allocation6 [shape = 's32[1]{0}', space=sflag, size = 0x4, scoped, tag = 'scoped memory for tpu_custom_call.1']
    #allocation7 [shape = 'u8[32768]{0}', space=vmem, size = 0x8000, scoped, tag = 'input window, operand 3, single buffered']
    #allocation8 [shape = 'u8[65536]{0}', space=vmem, size = 0x10000, scoped, tag = 'input window, operand 5, single buffered']
    #allocation9 [shape = 's32[1]{0}', space=sflag, size = 0x4, scoped, tag = 'scoped memory for tpu_custom_call.1']
    #allocation10 [shape = 'u8[16384]{0}', space=vmem, size = 0x4000, scoped, tag = 'output window, operand 0, single buffered']
    %12 = vsyncpa [#allocation3], 0
    %13 = vsyncpa [#allocation6], 0
    %14 = vsyncpa [#allocation9], 0
    %15 = vsyncpa [#allocation4], 0
    // Predicated region
    $region2: #{tpu_custom_call.1} parent=1 // pred_check
      _
    $region3: #{tpu_custom_call.1} parent=1 // pred_check_branch
      %17 = sbr.rel (0) target = $region5
    $region4: #{tpu_custom_call.1} parent=1 // pred_region
      %s19 = ssub.s32 128, 128
      %20 = vsyncadd [#allocation3], %s19
      %s21 = sshll.u32 [#allocation2], 4
      %s22 = int_to_ptr.vmem [resolvable:$true] %s21
      %27 = dma.hbm_to_vmem [thread:$0]  %s0, 128, %s22, [#allocation3], 64, 64, 4
    $region5: #{tpu_custom_call.1} parent=1 // pred_fallthru
      _
    // Predicated region
    $region6: #{tpu_custom_call.1} parent=1 // pred_check
      _
    $region7: #{tpu_custom_call.1} parent=1 // pred_check_branch
      %29 = sbr.rel (0) target = $region9
    $region8: #{tpu_custom_call.1} parent=1 // pred_region
      %s31 = ssub.s32 512, 512
      %32 = vsyncadd [#allocation6], %s31
      %s33 = sshll.u32 [#allocation5], 4
      %s34 = int_to_ptr.vmem [resolvable:$true] %s33
      %39 = dma.hbm_to_vmem [thread:$0]  %s1, 512, %s34, [#allocation6], 64, 64, 4
    $region9: #{tpu_custom_call.1} parent=1 // pred_fallthru
      _
    // Predicated region
    $region10: #{tpu_custom_call.1} parent=1 // pred_check
      _
    $region11: #{tpu_custom_call.1} parent=1 // pred_check_branch
      %41 = sbr.rel (0) target = $region13
    $region12: #{tpu_custom_call.1} parent=1 // pred_region
      _
    $region13: #{tpu_custom_call.1} parent=1 // pred_fallthru
      _
    // Predicated region
    $region14: #{tpu_custom_call.1} parent=1 // pred_check
      _
    $region15: #{tpu_custom_call.1} parent=1 // pred_check_branch
      %43 = sbr.rel (0) target = $region17
    $region16: #{tpu_custom_call.1} parent=1 // pred_region
      %s45 = ssub.s32 1024, 1024
      %46 = vsyncadd [#allocation6], %s45
      %s47 = sshll.u32 [#allocation7], 4
      %s48 = int_to_ptr.vmem [resolvable:$true] %s47
      %53 = dma.hbm_to_vmem [thread:$0]  %s3, 1024, %s48, [#allocation6], 64, 64, 4
    $region17: #{tpu_custom_call.1} parent=1 // pred_fallthru
      _
    // Predicated region
    $region18: #{tpu_custom_call.1} parent=1 // pred_check
      _
    $region19: #{tpu_custom_call.1} parent=1 // pred_check_branch
      %55 = sbr.rel (0) target = $region21
    $region20: #{tpu_custom_call.1} parent=1 // pred_region
      _
    $region21: #{tpu_custom_call.1} parent=1 // pred_fallthru
      _
    // Predicated region
    $region22: #{tpu_custom_call.1} parent=1 // pred_check
      _
    $region23: #{tpu_custom_call.1} parent=1 // pred_check_branch
      %57 = sbr.rel (0) target = $region25
    $region24: #{tpu_custom_call.1} parent=1 // pred_region
      %s59 = ssub.s32 2048, 2048
      %60 = vsyncadd [#allocation9], %s59
      %s61 = sshll.u32 [#allocation8], 4
      %s62 = int_to_ptr.vmem [resolvable:$true] %s61
      %67 = dma.hbm_to_vmem [thread:$0]  %s5, 2048, %s62, [#allocation9], 128, 128, 8
    $region25: #{tpu_custom_call.1} parent=1 // pred_fallthru
      _
    // Predicated region
    $region26: #{tpu_custom_call.1} parent=1 // pred_check
      _
    $region27: #{tpu_custom_call.1} parent=1 // pred_check_branch
      %69 = sbr.rel (0) target = $region29
    $region28: #{tpu_custom_call.1} parent=1 // pred_region
      _
    $region29: #{tpu_custom_call.1} parent=1 // pred_fallthru
      _
    // Predicated region
    $region30: #{tpu_custom_call.1} parent=1 // pred_check
      _
    $region31: #{tpu_custom_call.1} parent=1 // pred_check_branch
      %71 = sbr.rel (0) target = $region33
    $region32: #{tpu_custom_call.1} parent=1 // pred_region
      %72 = dma.done [#allocation3], 128
    $region33: #{tpu_custom_call.1} parent=1 // pred_fallthru
      _
    // Predicated region
    $region34: #{tpu_custom_call.1} parent=1 // pred_check
      _
    $region35: #{tpu_custom_call.1} parent=1 // pred_check_branch
      %74 = sbr.rel (0) target = $region37
    $region36: #{tpu_custom_call.1} parent=1 // pred_region
      %75 = dma.done [#allocation6], 512
    $region37: #{tpu_custom_call.1} parent=1 // pred_fallthru
      _
    // Predicated region
    $region38: #{tpu_custom_call.1} parent=1 // pred_check
      _
    $region39: #{tpu_custom_call.1} parent=1 // pred_check_branch
      %77 = sbr.rel (0) target = $region41
    $region40: #{tpu_custom_call.1} parent=1 // pred_region
      %78 = dma.done [#allocation6], 1024
    $region41: #{tpu_custom_call.1} parent=1 // pred_fallthru
      _
    // Predicated region
    $region42: #{tpu_custom_call.1} parent=1 // pred_check
      _
    $region43: #{tpu_custom_call.1} parent=1 // pred_check_branch
      %80 = sbr.rel (0) target = $region45
    $region44: #{tpu_custom_call.1} parent=1 // pred_region
      %81 = dma.done [#allocation9], 2048
    $region45: #{tpu_custom_call.1} parent=1 // pred_fallthru
      _
    %v83 = vld [vmem:[#allocation2] sm:$0xf]
    %v84 = vld [vmem:[#allocation2 + $0x4] sm:$0xf]
    %v85 = vld [vmem:[#allocation5] sm:$0xf]
    %v86 = vld [vmem:[#allocation5 + $0x4] sm:$0xf]
    %v87 = vld [vmem:[#allocation5 + $0x8] sm:$0xf]
    %v88 = vld [vmem:[#allocation5 + $0xc] sm:$0xf]
    %v89 = vld [vmem:[#allocation5 + $0x10] sm:$0xf]
    %v90 = vld [vmem:[#allocation5 + $0x14] sm:$0xf]
    %v91 = vld [vmem:[#allocation5 + $0x18] sm:$0xf]
    %v92 = vld [vmem:[#allocation5 + $0x1c] sm:$0xf]
    %v93 = vld [vmem:[%s2] sm:$0x1]
    %v95 = vlaneseq
    %v96 = vshrl.u32 %v95, 7
    %v97 = vsub.s32 0, %v96
    %v98 = vrot.slane %v93, %v97
    %v102 = vunpack.c.l.b16 %v83
    %v103 = vunpack.c.l.b16 %v84
    %v104 = vpack.c.b16 %v103, %v102
    %v113 = vunpack.c.l.b16 %v85
    %v114 = vunpack.c.l.b16 %v86
    %v115 = vunpack.c.l.b16 %v87
    %v116 = vunpack.c.l.b16 %v88
    %v117 = vunpack.c.l.b16 %v89
    %v118 = vunpack.c.l.b16 %v90
    %v119 = vunpack.c.l.b16 %v91
    %v120 = vunpack.c.l.b16 %v92
    %v121 = vpack.c.b16 %v114, %v113
    %v122 = vpack.c.b16 %v116, %v115
    %v123 = vpack.c.b16 %v118, %v117
    %v124 = vpack.c.b16 %v120, %v119
    %vm129 = vcmask 523264
    %v131 = vsel %vm129, %v104, 0
    %133 = vmatprep.subr.bf16.mxu0 0
    %134 = vmatpush1.bf16.msra.mxu0 %v121
    %135 = vmatprep.subr.bf16.mxu0 0
    %136 = vmatpush1.bf16.msra.mxu0 %v122
    %137 = vmatprep.subr.bf16.mxu0 0
    %138 = vmatpush1.bf16.msra.mxu0 %v123
    %139 = vmatprep.subr.bf16.mxu0 0
    %140 = vmatpush1.bf16.msra.mxu0 %v124
    %141 = vmatprep.subr.bf16.mxu0 0
    %142 = vmatpush1.bf16.msra.mxu0 0
    %143 = vmatprep.subr.bf16.mxu0 0
    %144 = vmatpush1.bf16.msra.mxu0 0
    %145 = vmatprep.subr.bf16.mxu0 0
    %146 = vmatpush1.bf16.msra.mxu0 0
    %147 = vmatprep.subr.bf16.mxu0 0
    %148 = vmatpush1.bf16.msra.mxu0 0
    %149 = vmatprep.subr.bf16.mxu0 0
    %150 = vmatpush1.bf16.msra.mxu0 0
    %151 = vmatprep.subr.bf16.mxu0 0
    %152 = vmatpush1.bf16.msra.mxu0 0
    %153 = vmatprep.subr.bf16.mxu0 0
    %154 = vmatpush1.bf16.msra.mxu0 0
    %155 = vmatprep.subr.bf16.mxu0 0
    %156 = vmatpush1.bf16.msra.mxu0 0
    %157 = vmatprep.subr.bf16.mxu0 0
    %158 = vmatpush1.bf16.msra.mxu0 0
    %159 = vmatprep.subr.bf16.mxu0 0
    %160 = vmatpush1.bf16.msra.mxu0 0
    %161 = vmatprep.subr.bf16.mxu0 0
    %162 = vmatpush1.bf16.msra.mxu0 0
    %163 = vmatprep.subr.bf16.mxu0 0
    %164 = vmatpush1.bf16.msra.mxu0 0
    %165 = vmatprep.mubr.bf16.mxu0 0
    %166 = vmatmul.mubr.bf16.gmra.mrb[0].mxu0 %v131
    %v167 = vpop.f32.mrb[0].mxu0
    %v168 = vadd.f32 %v98, %v167
    %v169 = vpop.f32.mrb[0].mxu0
    %v170 = vpop.f32.mrb[0].mxu0
    %v171 = vadd.f32 %v98, %v170
    %v172 = vpop.f32.mrb[0].mxu0
    %173 = vdwg.mxu0
    %vm174 = vcmp.gt.f32.partialorder %v168, 0.0
    %vm175 = vcmp.gt.f32.partialorder %v171, 0.0
    %v176 = vmul.f32 %v168, 0.2
    %v177 = vmul.f32 %v171, 0.2
    %v178 = vsel %vm174, %v168, %v176
    %v179 = vsel %vm175, %v171, %v177
    %v180 = vpack.c.bf16 %v179, %v178
    %v181 = vld [vmem:[#allocation7] sm:$0xf]
    %v182 = vld [vmem:[#allocation7 + $0x4] sm:$0xf]
    %v183 = vld [vmem:[#allocation7 + $0x8] sm:$0xf]
    %v184 = vld [vmem:[#allocation7 + $0xc] sm:$0xf]
    %v185 = vld [vmem:[#allocation7 + $0x10] sm:$0xf]
    %v186 = vld [vmem:[#allocation7 + $0x14] sm:$0xf]
    %v187 = vld [vmem:[#allocation7 + $0x18] sm:$0xf]
    %v188 = vld [vmem:[#allocation7 + $0x1c] sm:$0xf]
    %v189 = vld [vmem:[#allocation7 + $0x20] sm:$0xf]
    %v190 = vld [vmem:[#allocation7 + $0x24] sm:$0xf]
    %v191 = vld [vmem:[#allocation7 + $0x28] sm:$0xf]
    %v192 = vld [vmem:[#allocation7 + $0x2c] sm:$0xf]
    %v193 = vld [vmem:[#allocation7 + $0x30] sm:$0xf]
    %v194 = vld [vmem:[#allocation7 + $0x34] sm:$0xf]
    %v195 = vld [vmem:[#allocation7 + $0x38] sm:$0xf]
    %v196 = vld [vmem:[#allocation7 + $0x3c] sm:$0xf]
    %v197 = vld [vmem:[%s4] sm:$0x1]
    %v199 = vlaneseq
    %v200 = vshrl.u32 %v199, 7
    %v201 = vsub.s32 0, %v200
    %v202 = vrot.slane %v197, %v201
    %v220 = vunpack.c.l.b16 %v181
    %v221 = vunpack.c.l.b16 %v182
    %v222 = vunpack.c.l.b16 %v183
    %v223 = vunpack.c.l.b16 %v184
    %v224 = vunpack.c.l.b16 %v185
    %v225 = vunpack.c.l.b16 %v186
    %v226 = vunpack.c.l.b16 %v187
    %v227 = vunpack.c.l.b16 %v188
    %v228 = vunpack.c.l.b16 %v189
    %v229 = vunpack.c.l.b16 %v190
    %v230 = vunpack.c.l.b16 %v191
    %v231 = vunpack.c.l.b16 %v192
    %v232 = vunpack.c.l.b16 %v193
    %v233 = vunpack.c.l.b16 %v194
    %v234 = vunpack.c.l.b16 %v195
    %v235 = vunpack.c.l.b16 %v196
    %v236 = vpack.c.b16 %v221, %v220
    %v237 = vpack.c.b16 %v223, %v222
    %v238 = vpack.c.b16 %v225, %v224
    %v239 = vpack.c.b16 %v227, %v226
    %v240 = vpack.c.b16 %v229, %v228
    %v241 = vpack.c.b16 %v231, %v230
    %v242 = vpack.c.b16 %v233, %v232
    %v243 = vpack.c.b16 %v235, %v234
    %252 = vmatprep.subr.bf16.mxu0 0
    %253 = vmatpush1.bf16.msra.mxu0 %v236
    %254 = vmatprep.subr.bf16.mxu0 0
    %255 = vmatpush1.bf16.msra.mxu0 %v237
    %256 = vmatprep.subr.bf16.mxu0 0
    %257 = vmatpush1.bf16.msra.mxu0 %v238
    %258 = vmatprep.subr.bf16.mxu0 0
    %259 = vmatpush1.bf16.msra.mxu0 %v239
    %260 = vmatprep.subr.bf16.mxu0 0
    %261 = vmatpush1.bf16.msra.mxu0 %v240
    %262 = vmatprep.subr.bf16.mxu0 0
    %263 = vmatpush1.bf16.msra.mxu0 %v241
    %264 = vmatprep.subr.bf16.mxu0 0
    %265 = vmatpush1.bf16.msra.mxu0 %v242
    %266 = vmatprep.subr.bf16.mxu0 0
    %267 = vmatpush1.bf16.msra.mxu0 %v243
    %268 = vmatprep.subr.bf16.mxu0 0
    %269 = vmatpush1.bf16.msra.mxu0 0
    %270 = vmatprep.subr.bf16.mxu0 0
    %271 = vmatpush1.bf16.msra.mxu0 0
    %272 = vmatprep.subr.bf16.mxu0 0
    %273 = vmatpush1.bf16.msra.mxu0 0
    %274 = vmatprep.subr.bf16.mxu0 0
    %275 = vmatpush1.bf16.msra.mxu0 0
    %276 = vmatprep.subr.bf16.mxu0 0
    %277 = vmatpush1.bf16.msra.mxu0 0
    %278 = vmatprep.subr.bf16.mxu0 0
    %279 = vmatpush1.bf16.msra.mxu0 0
    %280 = vmatprep.subr.bf16.mxu0 0
    %281 = vmatpush1.bf16.msra.mxu0 0
    %282 = vmatprep.subr.bf16.mxu0 0
    %283 = vmatpush1.bf16.msra.mxu0 0
    %284 = vmatprep.mubr.bf16.mxu0 0
    %285 = vmatmul.mubr.bf16.gmra.mrb[0].mxu0 %v180
    %v286 = vpop.f32.mrb[0].mxu0
    %v287 = vadd.f32 %v202, %v286
    %v288 = vpop.f32.mrb[0].mxu0
    %v289 = vpop.f32.mrb[0].mxu0
    %v290 = vadd.f32 %v202, %v289
    %v291 = vpop.f32.mrb[0].mxu0
    %292 = vdwg.mxu0
    %v293 = vmax.f32 %v287, 0.0
    %v294 = vmax.f32 %v290, 0.0
    %v295 = vpack.c.bf16 %v294, %v293
    %v296 = vld [vmem:[#allocation8] sm:$0xff]
    %v297 = vld [vmem:[#allocation8 + $0x8] sm:$0xff]
    %v298 = vld [vmem:[#allocation8 + $0x10] sm:$0xff]
    %v299 = vld [vmem:[#allocation8 + $0x18] sm:$0xff]
    %v300 = vld [vmem:[#allocation8 + $0x20] sm:$0xff]
    %v301 = vld [vmem:[#allocation8 + $0x28] sm:$0xff]
    %v302 = vld [vmem:[#allocation8 + $0x30] sm:$0xff]
    %v303 = vld [vmem:[#allocation8 + $0x38] sm:$0xff]
    %v304 = vld [vmem:[#allocation8 + $0x40] sm:$0xff]
    %v305 = vld [vmem:[#allocation8 + $0x48] sm:$0xff]
    %v306 = vld [vmem:[#allocation8 + $0x50] sm:$0xff]
    %v307 = vld [vmem:[#allocation8 + $0x58] sm:$0xff]
    %v308 = vld [vmem:[#allocation8 + $0x60] sm:$0xff]
    %v309 = vld [vmem:[#allocation8 + $0x68] sm:$0xff]
    %v310 = vld [vmem:[#allocation8 + $0x70] sm:$0xff]
    %v311 = vld [vmem:[#allocation8 + $0x78] sm:$0xff]
    %v312 = vld [vmem:[%s6] sm:$0x3]
    %v314 = vlaneseq
    %v315 = vshrl.u32 %v314, 7
    %v316 = vsub.s32 0, %v315
    %v317 = vrot.slane %v312, %v316
    %v318 = vlaneseq
    %v319 = vshrl.u32 %v318, 7
    %v320 = vsub.s32 1, %v319
    %v321 = vrot.slane %v312, %v320
    %v340 = vunpack.c.l.b16 %v296
    %v341 = vunpack.c.h.b16 %v296
    %v342 = vunpack.c.l.b16 %v297
    %v343 = vunpack.c.h.b16 %v297
    %v344 = vunpack.c.l.b16 %v298
    %v345 = vunpack.c.h.b16 %v298
    %v346 = vunpack.c.l.b16 %v299
    %v347 = vunpack.c.h.b16 %v299
    %v348 = vunpack.c.l.b16 %v300
    %v349 = vunpack.c.h.b16 %v300
    %v350 = vunpack.c.l.b16 %v301
    %v351 = vunpack.c.h.b16 %v301
    %v352 = vunpack.c.l.b16 %v302
    %v353 = vunpack.c.h.b16 %v302
    %v354 = vunpack.c.l.b16 %v303
    %v355 = vunpack.c.h.b16 %v303
    %v356 = vunpack.c.l.b16 %v304
    %v357 = vunpack.c.h.b16 %v304
    %v358 = vunpack.c.l.b16 %v305
    %v359 = vunpack.c.h.b16 %v305
    %v360 = vunpack.c.l.b16 %v306
    %v361 = vunpack.c.h.b16 %v306
    %v362 = vunpack.c.l.b16 %v307
    %v363 = vunpack.c.h.b16 %v307
    %v364 = vunpack.c.l.b16 %v308
    %v365 = vunpack.c.h.b16 %v308
    %v366 = vunpack.c.l.b16 %v309
    %v367 = vunpack.c.h.b16 %v309
    %v368 = vunpack.c.l.b16 %v310
    %v369 = vunpack.c.h.b16 %v310
    %v370 = vunpack.c.l.b16 %v311
    %v371 = vunpack.c.h.b16 %v311
    %v372 = vpack.c.b16 %v342, %v340
    %v373 = vpack.c.b16 %v343, %v341
    %v374 = vpack.c.b16 %v346, %v344
    %v375 = vpack.c.b16 %v347, %v345
    %v376 = vpack.c.b16 %v350, %v348
    %v377 = vpack.c.b16 %v351, %v349
    %v378 = vpack.c.b16 %v354, %v352
    %v379 = vpack.c.b16 %v355, %v353
    %v380 = vpack.c.b16 %v358, %v356
    %v381 = vpack.c.b16 %v359, %v357
    %v382 = vpack.c.b16 %v362, %v360
    %v383 = vpack.c.b16 %v363, %v361
    %v384 = vpack.c.b16 %v366, %v364
    %v385 = vpack.c.b16 %v367, %v365
    %v386 = vpack.c.b16 %v370, %v368
    %v387 = vpack.c.b16 %v371, %v369
    %404 = vmatprep.subr.bf16.mxu0 %v373
    %405 = vmatpush1.bf16.msra.mxu0 %v372
    %406 = vmatprep.subr.bf16.mxu0 %v375
    %407 = vmatpush1.bf16.msra.mxu0 %v374
    %408 = vmatprep.subr.bf16.mxu0 %v377
    %409 = vmatpush1.bf16.msra.mxu0 %v376
    %410 = vmatprep.subr.bf16.mxu0 %v379
    %411 = vmatpush1.bf16.msra.mxu0 %v378
    %412 = vmatprep.subr.bf16.mxu0 %v381
    %413 = vmatpush1.bf16.msra.mxu0 %v380
    %414 = vmatprep.subr.bf16.mxu0 %v383
    %415 = vmatpush1.bf16.msra.mxu0 %v382
    %416 = vmatprep.subr.bf16.mxu0 %v385
    %417 = vmatpush1.bf16.msra.mxu0 %v384
    %418 = vmatprep.subr.bf16.mxu0 %v387
    %419 = vmatpush1.bf16.msra.mxu0 %v386
    %420 = vmatprep.subr.bf16.mxu0 0
    %421 = vmatpush1.bf16.msra.mxu0 0
    %422 = vmatprep.subr.bf16.mxu0 0
    %423 = vmatpush1.bf16.msra.mxu0 0
    %424 = vmatprep.subr.bf16.mxu0 0
    %425 = vmatpush1.bf16.msra.mxu0 0
    %426 = vmatprep.subr.bf16.mxu0 0
    %427 = vmatpush1.bf16.msra.mxu0 0
    %428 = vmatprep.subr.bf16.mxu0 0
    %429 = vmatpush1.bf16.msra.mxu0 0
    %430 = vmatprep.subr.bf16.mxu0 0
    %431 = vmatpush1.bf16.msra.mxu0 0
    %432 = vmatprep.subr.bf16.mxu0 0
    %433 = vmatpush1.bf16.msra.mxu0 0
    %434 = vmatprep.subr.bf16.mxu0 0
    %435 = vmatpush1.bf16.msra.mxu0 0
    %436 = vmatprep.mubr.bf16.mxu0 0
    %437 = vmatmul.mubr.bf16.gmra.mrb[0].mxu0 %v295
    %v438 = vpop.f32.mrb[0].mxu0
    %v439 = vadd.f32 %v317, %v438
    %v440 = vpop.f32.mrb[0].mxu0
    %v441 = vadd.f32 %v321, %v440
    %v442 = vpop.f32.mrb[0].mxu0
    %v443 = vadd.f32 %v317, %v442
    %v444 = vpop.f32.mrb[0].mxu0
    %v445 = vadd.f32 %v321, %v444
    %446 = vdwg.mxu0
    %v447 = vmax.f32 %v439, 0.0
    %v448 = vmax.f32 %v441, 0.0
    %v449 = vmax.f32 %v443, 0.0
    %v450 = vmax.f32 %v445, 0.0
    %451 = vst [vmem:[#allocation10] sm:$0xff] %v447
    %452 = vst [vmem:[#allocation10 + $0x8] sm:$0xff] %v448
    %453 = vst [vmem:[#allocation10 + $0x10] sm:$0xff] %v449
    %454 = vst [vmem:[#allocation10 + $0x18] sm:$0xff] %v450
    // Predicated region
    $region46: #{tpu_custom_call.1} parent=1 // pred_check
      _
    $region47: #{tpu_custom_call.1} parent=1 // pred_check_branch
      %456 = sbr.rel (0) target = $region49
    $region48: #{tpu_custom_call.1} parent=1 // pred_region
      %s458 = ssub.s32 512, 512
      %459 = vsyncadd [#allocation4], %s458
      %s460 = sshll.u32 [#allocation10], 4
      %s461 = int_to_ptr.vmem [resolvable:$true] %s460
      %466 = dma.vmem_to_hbm [thread:$0]  %s461, 512, %s7, [#allocation4], 256, 256, 16
    $region49: #{tpu_custom_call.1} parent=1 // pred_fallthru
      _
    // Predicated region
    $region50: #{tpu_custom_call.1} parent=1 // pred_check
      _
    $region51: #{tpu_custom_call.1} parent=1 // pred_check_branch
      %468 = sbr.rel (0) target = $region53
    $region52: #{tpu_custom_call.1} parent=1 // pred_region
      %469 = dma.done [#allocation4], 512
    $region53: #{tpu_custom_call.1} parent=1 // pred_fallthru
      _
    %470 = vsyncpa [#allocation3], 1
    %471 = vsyncpa [#allocation6], 1
    %472 = vsyncpa [#allocation9], 1
    %473 = vsyncpa [#allocation4], 1

</llo_original>
